<compile_context>
chip_gen: v7x
topology: tpu7x:2x2x1
jax: 0.10.0
libtpu: 0.0.40
codegen_flags: <defaults>
</compile_context>

<pallas_src>
import functools

import jax
import jax.numpy as jnp
import numpy as np
from jax.experimental import pallas as pl
from jax.experimental.pallas import tpu as pltpu

_BLOCK_BYTES = 2 * 1024 * 1024       # ~2 MiB of input per block (near HBM roofline knee)
_VMEM_LIMIT = 32 * 1024 * 1024       # safe on v5e/v6e (128 MiB) and v7x (64 MiB)


def _rdown(x, m):
    return (x // m) * m


def _rup(x, m):
    return ((x + m - 1) // m) * m


def _compiler_params(sems):
    return pltpu.CompilerParams(dimension_semantics=sems, vmem_limit_bytes=_VMEM_LIMIT)


# ---------------------------------------------------------------------------
# Kernels
# ---------------------------------------------------------------------------
def _softmax_block_kernel(x_ref, o_ref, *, inv_temp, axis):
    """Whole-reduction-axis-in-block softmax, temperature folded after the shift."""
    x = x_ref[...].astype(jnp.float32)
    if inv_temp >= 0:
        m = jnp.max(x, axis=axis, keepdims=True)
    else:  # negative temperature: the numerically safe shift is the min of x
        m = jnp.min(x, axis=axis, keepdims=True)
    e = jnp.exp((x - m) * inv_temp)
    s = jnp.sum(e, axis=axis, keepdims=True)
    o_ref[...] = (e * pl.reciprocal(s, approx=False)).astype(o_ref.dtype)


def _softmax_stats_kernel(x_ref, m_ref, l_ref, *, inv_temp, cols):
    """Pass 1 of the two-pass path: online running max/sum over column blocks."""
    j = pl.program_id(1)
    neutral = -jnp.inf if inv_temp >= 0 else jnp.inf

    @pl.when(j == 0)
    def _():
        m_ref[...] = jnp.full(m_ref.shape, neutral, m_ref.dtype)
        l_ref[...] = jnp.zeros(l_ref.shape, l_ref.dtype)

    x = x_ref[...].astype(jnp.float32)
    cols_tile = x.shape[-1]
    ids = j * cols_tile + jax.lax.broadcasted_iota(jnp.int32, x.shape, 1)
    x = jnp.where(ids < cols, x, neutral)   # boundary columns contribute exp(...)=0

    m_old = m_ref[...]
    if inv_temp >= 0:
        m_new = jnp.maximum(m_old, jnp.max(x, axis=-1, keepdims=True))
    else:
        m_new = jnp.minimum(m_old, jnp.min(x, axis=-1, keepdims=True))
    l_ref[...] = (l_ref[...] * jnp.exp((m_old - m_new) * inv_temp)
                  + jnp.sum(jnp.exp((x - m_new) * inv_temp), axis=-1, keepdims=True))
    m_ref[...] = m_new


def _softmax_norm_kernel(x_ref, m_ref, l_ref, o_ref, *, inv_temp):
    """Pass 2 of the two-pass path: normalize with the precomputed row stats."""
    x = x_ref[...].astype(jnp.float32)
    e = jnp.exp((x - m_ref[...]) * inv_temp)
    o_ref[...] = (e * pl.reciprocal(l_ref[...], approx=False)).astype(o_ref.dtype)


# ---------------------------------------------------------------------------
# Launchers
# ---------------------------------------------------------------------------
def _softmax_lane_2d(x2, inv_temp, block_bytes):
    """Softmax over the last axis of a 2D array [rows, cols]."""
    rows, cols = x2.shape
    itemsize = jnp.dtype(x2.dtype).itemsize
    sub = 8 * max(1, 4 // itemsize)        # sublane pack: 8 f32 / 16 bf16 / 32 int8
    n = rows * cols

    if sub * cols * itemsize <= block_bytes:
        # -- Single pass: whole rows fit comfortably in one block.
        if rows <= sub:
            tile_rows = rows               # full-extent leading block: always legal
        else:
            tile_rows = max(sub, _rdown(block_bytes // max(1, cols * itemsize), sub))
            tile_rows = min(tile_rows, _rdown(rows, sub))
            # keep >=2 "parallel" programs so v7x's two TensorCores both get work
            tile_rows = min(tile_rows, max(sub, _rdown(_rup(rows, sub) // 2, sub)))
        cost = pl.CostEstimate(flops=5 * n, transcendentals=n,
                               bytes_accessed=2 * n * itemsize)
        return pl.pallas_call(
            functools.partial(_softmax_block_kernel, inv_temp=inv_temp, axis=-1),
            out_shape=jax.ShapeDtypeStruct((rows, cols), x2.dtype),
            grid=(pl.cdiv(rows, tile_rows),),
            in_specs=[pl.BlockSpec((tile_rows, cols), lambda i: (i, 0))],
            out_specs=pl.BlockSpec((tile_rows, cols), lambda i: (i, 0)),
            compiler_params=_compiler_params(("parallel",)),
            cost_estimate=cost,
        )(x2)

    # -- Two-pass online softmax: tile the (long) softmax axis as well so VMEM
    #    stays bounded and the pipeline keeps ~block_bytes blocks.
    cols_tile = min(_rup(cols, 128),
                    max(128, _rdown(block_bytes // (sub * itemsize), 128)))
    cols_tile = min(cols_tile, 4096)       # leave room for several sublane rows
    tile_rows = max(sub, _rdown(block_bytes // max(1, cols_tile * itemsize), sub))
    tile_rows = min(tile_rows, _rup(rows, sub))
    if rows > sub:
        tile_rows = min(tile_rows, max(sub, _rdown(_rup(rows, sub) // 2, sub)))
    grid = (pl.cdiv(rows, tile_rows), pl.cdiv(cols, cols_tile))

    stats_cost = pl.CostEstimate(flops=5 * n, transcendentals=n,
                                 bytes_accessed=n * itemsize)
    m, l = pl.pallas_call(
        functools.partial(_softmax_stats_kernel, inv_temp=inv_temp, cols=cols),
        out_shape=(jax.ShapeDtypeStruct((rows, 1), jnp.float32),
                   jax.ShapeDtypeStruct((rows, 1), jnp.float32)),
        grid=grid,
        in_specs=[pl.BlockSpec((tile_rows, cols_tile), lambda i, j: (i, j))],
        out_specs=(pl.BlockSpec((tile_rows, 1), lambda i, j: (i, 0)),
                   pl.BlockSpec((tile_rows, 1), lambda i, j: (i, 0))),
        compiler_params=_compiler_params(("parallel", "arbitrary")),
        cost_estimate=stats_cost,
    )(x2)

    norm_cost = pl.CostEstimate(flops=3 * n, transcendentals=n,
                                bytes_accessed=2 * n * itemsize)
    return pl.pallas_call(
        functools.partial(_softmax_norm_kernel, inv_temp=inv_temp),
        out_shape=jax.ShapeDtypeStruct((rows, cols), x2.dtype),
        grid=grid,
        in_specs=[pl.BlockSpec((tile_rows, cols_tile), lambda i, j: (i, j)),
                  pl.BlockSpec((tile_rows, 1), lambda i, j: (i, 0)),
                  pl.BlockSpec((tile_rows, 1), lambda i, j: (i, 0))],
        out_specs=pl.BlockSpec((tile_rows, cols_tile), lambda i, j: (i, j)),
        compiler_params=_compiler_params(("parallel", "parallel")),
        cost_estimate=norm_cost,
    )(x2, m, l)


def _softmax_sublane_3d(x3, inv_temp, block_bytes):
    """Softmax over axis=1 of (pre, L, post), post >= 128, pre batched into blocks."""
    pre, L, post = x3.shape
    itemsize = jnp.dtype(x3.dtype).itemsize
    n = pre * L * post

    post_tile = min(_rup(post, 128),
                    max(128, _rdown(block_bytes // max(1, L * itemsize), 128)))
    pre_tile = max(1, min(pre, block_bytes // max(1, L * post_tile * itemsize)))
    # keep >=2 "parallel" programs for v7x megacore when the problem allows it
    if pre_tile >= pre and post_tile >= post:
        if pre > 1:
            pre_tile = max(1, pre // 2)
        elif post > 128:
            post_tile = max(128, _rdown(_rup(post, 128) // 2, 128))
    grid = (pl.cdiv(pre, pre_tile), pl.cdiv(post, post_tile))

    cost = pl.CostEstimate(flops=5 * n, transcendentals=n,
                           bytes_accessed=2 * n * itemsize)
    return pl.pallas_call(
        functools.partial(_softmax_block_kernel, inv_temp=inv_temp, axis=1),
        out_shape=jax.ShapeDtypeStruct((pre, L, post), x3.dtype),
        grid=grid,
        in_specs=[pl.BlockSpec((pre_tile, L, post_tile), lambda i, j: (i, 0, j))],
        out_specs=pl.BlockSpec((pre_tile, L, post_tile), lambda i, j: (i, 0, j)),
        compiler_params=_compiler_params(("parallel", "parallel")),
        cost_estimate=cost,
    )(x3)


def softmax_temperature(x, temperature: float = 1.0, dim: int = 0,
                        block_bytes: int = _BLOCK_BYTES):
    """Pallas equivalent of SoftmaxTemperature(temperature, dim).forward(x)."""
    temperature = float(temperature)
    if temperature == 0.0:
        raise ValueError("temperature must be nonzero (x / 0 is undefined)")
    inv_temp = 1.0 / temperature

    ndim = x.ndim
    dim = dim % ndim
    shape = x.shape
    itemsize = jnp.dtype(x.dtype).itemsize

    L = shape[dim]
    pre = int(np.prod(shape[:dim], dtype=np.int64)) if dim > 0 else 1
    post = int(np.prod(shape[dim + 1:], dtype=np.int64)) if dim < ndim - 1 else 1

    if post == 1:
        # Softmax axis already maps to lanes: pure reshape, no transpose.
        out = _softmax_lane_2d(x.reshape(pre, L), inv_temp, block_bytes)
        return out.reshape(shape)

    sublane_ok = (post >= 128) and (L * 128 * itemsize <= 4 * block_bytes)
    if sublane_ok:
        # Softmax axis on sublanes; `post` stays lane-dense, `pre` batched in.
        out = _softmax_sublane_3d(x.reshape(pre, L, post), inv_temp, block_bytes)
        return out.reshape(shape)

    # Lane-sparse case (post < 128) or very long L: one wrapper-side transpose
    # onto the lane path beats masked vst.msk stores / an oversized sublane block.
    xt = jnp.swapaxes(x.reshape(pre, L, post), 1, 2).reshape(pre * post, L)
    out = _softmax_lane_2d(xt, inv_temp, block_bytes)
    out = jnp.swapaxes(out.reshape(pre, post, L), 1, 2)
    return out.reshape(shape)


if __name__ == "__main__":
    key = jax.random.PRNGKey(0)
    k1, k2, k3, k4, k5 = jax.random.split(key, 5)

    # 1) Module default: dim=0 on a 2D tensor (post < 128 -> transposed lane path).
    x1 = jax.random.normal(k1, (8, 32), dtype=jnp.float32)
    y1 = jax.block_until_ready(softmax_temperature(x1, temperature=0.5, dim=0))
    ref1 = jax.nn.softmax(x1 / 0.5, axis=0)
    np.testing.assert_allclose(np.asarray(y1), np.asarray(ref1), rtol=1e-5, atol=1e-6)

    # 2) Channel softmax on NCHW (sublane path, pre batched into the block).
    x2 = jax.random.normal(k2, (2, 4, 16, 16), dtype=jnp.float32)
    y2 = jax.block_until_ready(softmax_temperature(x2, temperature=2.0, dim=1))
    ref2 = jax.nn.softmax(x2 / 2.0, axis=1)
    np.testing.assert_allclose(np.asarray(y2), np.asarray(ref2), rtol=1e-5, atol=1e-6)

    # 3) Last-dim softmax (lane path, single pass) + negative temperature.
    x3 = jax.random.normal(k3, (8, 32), dtype=jnp.float32)
    y3 = jax.block_until_ready(softmax_temperature(x3, temperature=1.0, dim=-1))
    ref3 = jax.nn.softmax(x3, axis=-1)
    np.testing.assert_allclose(np.asarray(y3), np.asarray(ref3), rtol=1e-5, atol=1e-6)
    y3n = jax.block_until_ready(softmax_temperature(x3, temperature=-1.5, dim=-1))
    ref3n = jax.nn.softmax(x3 / -1.5, axis=-1)
    np.testing.assert_allclose(np.asarray(y3n), np.asarray(ref3n), rtol=1e-5, atol=1e-6)

    # 4) bf16 input exercising the 16-row sublane packing on the lane path.
    x4 = jax.random.normal(k4, (32, 128), dtype=jnp.float32).astype(jnp.bfloat16)
    y4 = jax.block_until_ready(softmax_temperature(x4, temperature=0.7, dim=1))
    ref4 = jax.nn.softmax(x4.astype(jnp.float32) / 0.7, axis=1).astype(jnp.bfloat16)
    np.testing.assert_allclose(
        np.asarray(y4, dtype=np.float32), np.asarray(ref4, dtype=np.float32),
        rtol=2e-2, atol=2e-3,
    )

    # 5) Two-pass online-softmax path (long softmax axis), forced via a small
    #    block budget; cols=1000 also exercises the column boundary mask.
    x5 = jax.random.normal(k5, (16, 1000), dtype=jnp.float32)
    y5 = jax.block_until_ready(
        softmax_temperature(x5, temperature=0.8, dim=-1, block_bytes=16 * 1024))
    ref5 = jax.nn.softmax(x5 / 0.8, axis=-1)
    np.testing.assert_allclose(np.asarray(y5), np.asarray(ref5), rtol=1e-5, atol=1e-6)

    print("KERNEL_OK")
</pallas_src>

<mosaic_0001>
module attributes {stable_mosaic.version = 11 : i64} {
  func.func @_softmax_block_kernel(%arg0: i32, %arg1: memref<16x8xf32, #tpu.memory_space<vmem>>, %arg2: memref<16x8xf32, #tpu.memory_space<vmem>>) attributes {dimension_semantics = [#tpu.dimension_semantics<parallel>], iteration_bounds = array<i64: 2>, scalar_prefetch = 0 : i64, scratch_operands = 0 : i64, tpu.core_type = #tpu.core_type<tc>, window_params = [{transform_indices = @transform_0, window_bounds = array<i64: 16, 8>}, {transform_indices = @transform_1, window_bounds = array<i64: 16, 8>}]} {
    %c0 = arith.constant 0 : index
    %c0_0 = arith.constant 0 : index
    %0 = vector.load %arg1[%c0, %c0_0] : memref<16x8xf32, #tpu.memory_space<vmem>>, vector<16x8xf32>
    %cst = arith.constant dense<0xFF800000> : vector<16xf32>
    %1 = vector.multi_reduction <maximumf>, %0, %cst [1] : vector<16x8xf32> to vector<16xf32>
    %2 = vector.shape_cast %1 : vector<16xf32> to vector<16x1xf32>
    %3 = vector.broadcast %2 : vector<16x1xf32> to vector<16x8xf32>
    %4 = arith.subf %0, %3 : vector<16x8xf32>
    %cst_1 = arith.constant 2.000000e+00 : f32
    %5 = vector.broadcast %cst_1 : f32 to vector<16x8xf32>
    %6 = arith.mulf %4, %5 : vector<16x8xf32>
    %7 = math.exp %6 : vector<16x8xf32>
    %cst_2 = arith.constant dense<0.000000e+00> : vector<16xf32>
    %8 = vector.multi_reduction <add>, %7, %cst_2 [1] : vector<16x8xf32> to vector<16xf32>
    %9 = vector.shape_cast %8 : vector<16xf32> to vector<16x1xf32>
    %10 = tpu.reciprocal %9 : vector<16x1xf32> -> vector<16x1xf32>
    %11 = vector.broadcast %10 : vector<16x1xf32> to vector<16x8xf32>
    %12 = arith.mulf %7, %11 : vector<16x8xf32>
    %c0_3 = arith.constant 0 : index
    %c0_4 = arith.constant 0 : index
    %13 = vector.load %arg2[%c0_3, %c0_4] : memref<16x8xf32, #tpu.memory_space<vmem>>, vector<16x8xf32>
    tpu.vector_store %arg2[%c0_3, %c0_4], %12 {strides = array<i32>} : memref<16x8xf32, #tpu.memory_space<vmem>>, vector<16x8xf32>,
    return
  }
  func.func @transform_0(%arg0: i32) -> (i32, i32) {
    %c0_i32 = arith.constant 0 : i32
    %c0_i32_0 = arith.constant 0 : i32
    return %arg0, %c0_i32 : i32, i32
  }
  func.func @transform_1(%arg0: i32) -> (i32, i32) {
    %c0_i32 = arith.constant 0 : i32
    %c0_i32_0 = arith.constant 0 : i32
    return %arg0, %c0_i32 : i32, i32
  }
}

</mosaic_0001>

<llo_original>
// kernel: tpu_custom_call.1
$region0: #{tpu_custom_call.1}
  #allocation0 [shape = 'u32[]', space=smem, size = 0x4, offset = 0x4, fixed_abs, tag = 'smem constant byte address 0x4 - core index']
  #allocation1 [shape = 'u32[144,128]{1,0:T(1,128)}', space=vmem, size = 0x12000, scoped, tag = 'internal scratch']
  %s0 = inlined_call_operand.vmem [shape: f32[32,8], index: 0, kind: input, shape index: {}]
  %s1 = inlined_call_operand.vmem [shape: f32[32,8], index: 1, kind: output, shape index: {}]
  %s2 = sld [smem:[#allocation0]]
  $region37: #{tpu_custom_call.1} parent=0
    _
  %s4 = ssub.s32 1, %s2
  %s5 = scalar_select 0, %s4, %s2
  loop: start=0, step=1, limit=4
  $region2: #{tpu_custom_call.1} parent=0 // loop_pre_header
    _
  $region3: #{tpu_custom_call.1} parent=0 // loop_header
    %s7 = sphi 0, %s11
    %p8 = scmp.ge.s32.totalorder %s7, 4
    %s17 = sphi 0, %s19
    %s20 = sphi 0, %s17
    %s21 = sphi 0, %s20
    %s37 = sphi 0, %s21
    %s43 = sphi 0, %s45
    %s46 = sphi 0, %s43
    %s47 = sphi 0, %s46
    %s63 = sphi 0, %s47
  $region4: #{tpu_custom_call.1} parent=0 // loop_header_branch
    %10 = sbr.rel (%p8) target = $region8
  $region5: #{tpu_custom_call.1} parent=0 // loop_body
    %s12 = ssub.s32 %s7, 1
    %s13 = ssub.s32 %s7, 2
    %s14 = sadd.s32 %s7, 1
    %s15 = ssub.s32 %s7, %s14
    %p16 = scmp.eq.s32.totalorder %s15, 0
    %s18 = sadd.s32 %s17, 1
    %s19 = scalar_select %p16, %s17, %s18
    %p22 = pneg %p16
    %p23 = scmp.eq.s32.totalorder %s7, 1
    %p24 = por %p22, %p23
    %p25 = scmp.ne.s32.totalorder %s17, %s20
    %p26 = scmp.eq.s32.totalorder %s7, 0
    %p27 = por %p25, %p26
    %p28 = scmp.ne.s32.totalorder %s17, %s20
    %p29 = scmp.eq.s32.totalorder %s12, 1
    %p30 = por %p28, %p29
    %p31 = scmp.ne.s32.totalorder %s20, %s21
    %p32 = scmp.eq.s32.totalorder %s12, 0
    %p33 = por %p31, %p32
    %p34 = scmp.ne.s32.totalorder %s20, %s21
    %p35 = scmp.eq.s32.totalorder %s13, 1
    %p36 = por %p34, %p35
    %p38 = scmp.ne.s32.totalorder %s21, %s37
    %p39 = scmp.eq.s32.totalorder %s13, 0
    %p40 = por %p38, %p39
    %s41 = ssub.s32 %s7, %s14
    %p42 = scmp.eq.s32.totalorder %s41, 0
    %s44 = sadd.s32 %s43, 1
    %s45 = scalar_select %p42, %s43, %s44
    %p48 = pneg %p42
    %p49 = scmp.eq.s32.totalorder %s7, 1
    %p50 = por %p48, %p49
    %p51 = scmp.ne.s32.totalorder %s43, %s46
    %p52 = scmp.eq.s32.totalorder %s7, 0
    %p53 = por %p51, %p52
    %p54 = scmp.ne.s32.totalorder %s43, %s46
    %p55 = scmp.eq.s32.totalorder %s12, 1
    %p56 = por %p54, %p55
    %p57 = scmp.ne.s32.totalorder %s46, %s47
    %p58 = scmp.eq.s32.totalorder %s12, 0
    %p59 = por %p57, %p58
    %p60 = scmp.ne.s32.totalorder %s46, %s47
    %p61 = scmp.eq.s32.totalorder %s13, 1
    %p62 = por %p60, %p61
    %p64 = scmp.ne.s32.totalorder %s47, %s63
    %p65 = scmp.eq.s32.totalorder %s13, 0
    %p66 = por %p64, %p65
    %p67 = scmp.le.s32.totalorder 1, %s7
    %p68 = scmp.lt.s32.totalorder %s7, 3
    %p69 = pnand %p67, %p68
    %p70 = pneg %p69
    // Predicated region
    $region9: #{tpu_custom_call.1} parent=5 // pred_check
      _
    $region10: #{tpu_custom_call.1} parent=5 // pred_check_branch
      %72 = sbr.rel (%p69) target = $region12
    $region11: #{tpu_custom_call.1} parent=5 // pred_region
      %s73 = ssub.s32 %s7, 1
    $region12: #{tpu_custom_call.1} parent=5 // pred_fallthru
      _
    %p74 = scmp.lt.s32.totalorder %s7, 2
    // Predicated region
    $region13: #{tpu_custom_call.1} parent=5 // pred_check
      %p75 = pneg %p74
    $region14: #{tpu_custom_call.1} parent=5 // pred_check_branch
      %77 = sbr.rel (%p75) target = $region16
    $region15: #{tpu_custom_call.1} parent=5 // pred_region
      // Predicated region
      $region17: #{tpu_custom_call.1} parent=15 // pred_check
        %p78 = pneg %p27
      $region18: #{tpu_custom_call.1} parent=15 // pred_check_branch
        %80 = sbr.rel (%p78) target = $region20
      $region19: #{tpu_custom_call.1} parent=15 // pred_region
        %s81 = smul.u32 2, %s7
        %p82 = scmp.lt.s32.totalorder %s81, 3
        %s83 = scalar_select %p82, %s81, 3
        %s84 = smul.addr %s83, 8
        %s85 = scalar_lea.vmem %s0, %s84
        %s86 = smul.u32 2, %s7
      $region20: #{tpu_custom_call.1} parent=15 // pred_fallthru
        _
    $region16: #{tpu_custom_call.1} parent=5 // pred_fallthru
      _
    %p87 = scmp.le.s32.totalorder 1, %s7
    %p88 = scmp.lt.s32.totalorder %s7, 3
    %p89 = pnand %p87, %p88
    %p90 = pneg %p89
    // Predicated region
    $region21: #{tpu_custom_call.1} parent=5 // pred_check
      _
    $region22: #{tpu_custom_call.1} parent=5 // pred_check_branch
      %92 = sbr.rel (%p89) target = $region24
    $region23: #{tpu_custom_call.1} parent=5 // pred_region
      %s93 = ssub.s32 %s7, 1
      %s94 = smul.u32 2, %s12
      %p95 = scmp.lt.s32.totalorder %s94, 3
      %s96 = scalar_select %p95, %s94, 3
      %s97 = smul.addr %s96, 8
      %s98 = scalar_lea.vmem %s0, %s97
      %p99 = pneg %p33
      %p100 = pneg %p30
      %p101 = pneg %p59
      %p102 = pneg %p56
      %s103 = smul.u32 2, %s12
      %p104 = scmp.lt.s32.totalorder %s103, 3
      %s105 = scalar_select %p104, %s103, 3
      %s106 = smul.addr %s105, 8
      %s107 = scalar_lea.vmem %s1, %s106
      %s108 = smul.u32 2, %s12
      %p109 = scmp.lt.s32.totalorder %s108, 3
      %s110 = scalar_select %p109, %s108, 3
      %s111 = smul.addr %s110, 8
      %s112 = scalar_lea.vmem %s0, %s111
      %s113 = smul.u32 2, %s12
      %s114 = smul.u32 2, %s12
      %p115 = scmp.lt.s32.totalorder %s114, 3
      %s116 = scalar_select %p115, %s114, 3
      %s117 = smul.addr %s116, 8
      %s118 = scalar_lea.vmem %s1, %s117
      %s119 = smul.u32 2, %s12
      %v120 = vld [vmem:[%s112] sm:$0xff]
      %v121 = vld [vmem:[%s112 + $0x8] sm:$0xff]
      %vm122 = vcmask 64512
      %v123 = vsel %vm122, %v120, -inf
      %124 = vmax.xlane.f32.xlu0 %v123
      %v125 = vpop.xlane.xlu0 %124
      %v126 = vsel %vm122, %v121, -inf
      %127 = vmax.xlane.f32.xlu0 %v126
      %v128 = vpop.xlane.xlu0 %127
      %v129 = vsub.f32 %v120, %v125
      %v130 = vsub.f32 %v121, %v128
      %v131 = vmul.f32 %v129, 2.0
      %v132 = vmul.f32 %v130, 2.0
      %v133 = vmul.f32 %v131, 1.442695
      %v134 = vpow.pop %v133
      %v135 = vmul.f32 %v132, 1.442695
      %v136 = vpow.pop %v135
      %v137 = vsel %vm122, %v134, 0.0
      %138 = vadd.xlane.f32.xlu0 %v137
      %v139 = vpop.xlane.xlu0 %138
      %v140 = vsel %vm122, %v136, 0.0
      %141 = vadd.xlane.f32.xlu0 %v140
      %v142 = vpop.xlane.xlu0 %141
      %v143 = vrcp.pop %v139
      %v144 = vrcp.pop %v142
      %v145 = vmul.f32 %v134, %v143
      %v146 = vmul.f32 %v136, %v144
      %147 = vst.msk [vmem:[%s118] sm:$0xff] %vm122, %v145
      %148 = vst.msk [vmem:[%s118 + $0x8] sm:$0xff] %vm122, %v146
      %s149 = smul.u32 2, %s12
      %p150 = scmp.lt.s32.totalorder %s149, 3
      %s151 = scalar_select %p150, %s149, 3
      %s152 = smul.addr %s151, 8
      %s153 = scalar_lea.vmem %s1, %s152
      // Predicated region
      $region25: #{tpu_custom_call.1} parent=23 // pred_check
        %p154 = pneg %p56
      $region26: #{tpu_custom_call.1} parent=23 // pred_check_branch
        %156 = sbr.rel (%p154) target = $region28
      $region27: #{tpu_custom_call.1} parent=23 // pred_region
        %s157 = smul.u32 2, %s12
      $region28: #{tpu_custom_call.1} parent=23 // pred_fallthru
        _
    $region24: #{tpu_custom_call.1} parent=5 // pred_fallthru
      _
    %p158 = scmp.le.s32.totalorder 2, %s7
    // Predicated region
    $region29: #{tpu_custom_call.1} parent=5 // pred_check
      %p159 = pneg %p158
    $region30: #{tpu_custom_call.1} parent=5 // pred_check_branch
      %161 = sbr.rel (%p159) target = $region32
    $region31: #{tpu_custom_call.1} parent=5 // pred_region
      %s162 = ssub.s32 %s7, 2
      // Predicated region
      $region33: #{tpu_custom_call.1} parent=31 // pred_check
        %p163 = pneg %p62
      $region34: #{tpu_custom_call.1} parent=31 // pred_check_branch
        %165 = sbr.rel (%p163) target = $region36
      $region35: #{tpu_custom_call.1} parent=31 // pred_region
        %s166 = smul.u32 2, %s13
        %p167 = scmp.lt.s32.totalorder %s166, 3
        %s168 = scalar_select %p167, %s166, 3
        %s169 = smul.addr %s168, 8
        %s170 = scalar_lea.vmem %s1, %s169
      $region36: #{tpu_custom_call.1} parent=31 // pred_fallthru
        _
    $region32: #{tpu_custom_call.1} parent=5 // pred_fallthru
      _
  $region6: #{tpu_custom_call.1} parent=0 // loop_footer
    %s11 = sadd.s32 1, %s7
  $region7: #{tpu_custom_call.1} parent=0 // loop_footer_branch
    %6 = sbr.rel target = $region3
  $region8: #{tpu_custom_call.1} parent=0 // loop_exit
    _

</llo_original>
